<compile_context>
chip_gen: v7x
topology: tpu7x:2x2x1
jax: 0.10.0
libtpu: 0.0.40
codegen_flags: <defaults>
</compile_context>

<pallas_src>
import functools

import jax
import jax.numpy as jnp
from jax.experimental import pallas as pl
from jax.experimental.pallas import tpu as pltpu


def gumbel_softmax_kernel(x_ref, w_ref, b_ref, g_ref,
                          sample_ref, scores_ref, ent_ref,
                          *, inv_temperature, straight_through):
    # ---- agent forward on the MXU, transposed output layout (C, tb) ----
    # lhs = W^T (C, H), rhs = x tile (tb, H), contract over H (the q @ k^T pattern).
    scores = jax.lax.dot_general(
        w_ref[...], x_ref[...],
        dimension_numbers=(((1,), (1,)), ((), ())),
        preferred_element_type=jnp.float32)                 # (C, tb), f32 accumulate
    scores = scores + b_ref[...].astype(jnp.float32)        # (C, tb) + (C, 1)
    scores_ref[...] = scores.astype(scores_ref.dtype)

    # ---- Gumbel-Softmax relaxed sample (RelaxedOneHotCategorical.rsample) ----
    y = (scores + g_ref[...].astype(jnp.float32)) * inv_temperature
    y_max = jnp.max(y, axis=0, keepdims=True)               # (1, tb)
    ey = jnp.exp(y - y_max)
    den = jnp.sum(ey, axis=0, keepdims=True)                # (1, tb)
    sample = ey * (1.0 / den)

    if straight_through:
        # Hard one-hot at argmax(sample) == argmax(y); derived from y so the
        # cross-sublane argmax does not depend on the exp/normalize chain.
        n_cat = y.shape[0]
        row = jax.lax.broadcasted_iota(jnp.int32, y.shape, 0)
        is_max = y == y_max
        first_idx = jnp.min(jnp.where(is_max, row, n_cat), axis=0, keepdims=True)
        sample = (row == first_idx).astype(sample.dtype)

    sample_ref[...] = sample.astype(sample_ref.dtype)

    # ---- Categorical(logits=scores).entropy():  H = log(s) - sum(p*z)/s ----
    z = scores - jnp.max(scores, axis=0, keepdims=True)
    p = jnp.exp(z)
    s = jnp.sum(p, axis=0, keepdims=True)                   # (1, tb)
    ent = jnp.log(s) - jnp.sum(p * z, axis=0, keepdims=True) / s
    ent_ref[...] = ent.astype(ent_ref.dtype)                # lane-dense (1, tb)


def _round_up(n, m):
    return ((n + m - 1) // m) * m


def _step_vmem_bytes(tb, H, C):
    """Per-grid-step VMEM estimate (double-buffered streams + resident weight)."""
    return 4 * (2 * tb * H          # x tile
                + 2 * C * tb        # gumbel noise tile
                + 2 * 2 * C * tb    # sample + scores output tiles
                + 2 * tb            # entropy tile
                + 2 * (H * C + C))  # resident weight + bias


def _pick_tb(B, H, C, budget_bytes=24 * 1024 * 1024):
    """Largest batch tile that fits the VMEM budget; single tile for small B."""
    full = _round_up(max(B, 8), 8)
    if full <= 8192 and _step_vmem_bytes(full, H, C) <= budget_bytes:
        return full                                   # one step: no extra overhead
    for cand in (8192, 4096, 2048, 1024, 512, 256, 128):   # lane-aligned tiles
        if _step_vmem_bytes(cand, H, C) <= budget_bytes:
            return cand
    return 128


def gumbel_softmax_forward(x, w, b, key, *, temperature=1.0,
                           straight_through=False, tb=None):
    """Returns (sample, scores, entropy) matching GumbelSoftmaxWrapper.forward."""
    B, H = x.shape
    C = w.shape[-1]
    if tb is None:
        tb = _pick_tb(B, H, C)
    num_tiles = pl.cdiv(B, tb)
    B_pad = num_tiles * tb
    if B_pad != B:
        x = jnp.pad(x, ((0, B_pad - B), (0, 0)))      # padded rows sliced off below

    w_t = jnp.transpose(w)                            # (C, H) for lane-dense compute
    b_col = jnp.reshape(b, (C, 1))                    # (C, 1) bias column
    # Host-side Gumbel noise (matches torch rsample semantics), transposed layout.
    g = jax.random.gumbel(key, (C, B_pad), dtype=jnp.float32)

    kernel = functools.partial(
        gumbel_softmax_kernel,
        inv_temperature=1.0 / float(temperature),
        straight_through=bool(straight_through))

    grid_spec = pltpu.PrefetchScalarGridSpec(
        num_scalar_prefetch=0,
        grid=(num_tiles,),
        in_specs=[
            pl.BlockSpec((tb, H), lambda i: (i, 0)),      # x tile (natural layout)
            pl.BlockSpec((C, H), lambda i: (0, 0)),       # W^T, VMEM-resident
            pl.BlockSpec((C, 1), lambda i: (0, 0)),       # bias column
            pl.BlockSpec((C, tb), lambda i: (0, i)),      # Gumbel noise tile
        ],
        out_specs=(
            pl.BlockSpec((C, tb), lambda i: (0, i)),      # sample^T, lane-dense
            pl.BlockSpec((C, tb), lambda i: (0, i)),      # scores^T, lane-dense
            pl.BlockSpec((1, tb), lambda i: (0, i)),      # entropy, lane-dense
        ),
    )

    vmem_limit = min(100 * 1024 * 1024,
                     max(32 * 1024 * 1024, int(_step_vmem_bytes(tb, H, C) * 1.25)))

    sample_t, scores_t, ent = pl.pallas_call(
        kernel,
        out_shape=(jax.ShapeDtypeStruct((C, B_pad), jnp.float32),
                   jax.ShapeDtypeStruct((C, B_pad), jnp.float32),
                   jax.ShapeDtypeStruct((1, B_pad), jnp.float32)),
        grid_spec=grid_spec,
        compiler_params=pltpu.CompilerParams(
            dimension_semantics=("parallel",),
            vmem_limit_bytes=vmem_limit),
    )(x, w_t, b_col, g)

    sample = jnp.transpose(sample_t)[:B]
    scores = jnp.transpose(scores_t)[:B]
    entropy = jnp.reshape(ent, (B_pad,))[:B]
    return sample, scores, entropy


if __name__ == "__main__":
    B, H, C = 16, 32, 16          # small demo shapes (batch, hidden, n_categories)
    temperature = 0.7

    key = jax.random.PRNGKey(0)
    kx, kw, kb, kn1, kn2 = jax.random.split(key, 5)
    x = jax.random.normal(kx, (B, H), dtype=jnp.float32)
    w = jax.random.normal(kw, (H, C), dtype=jnp.float32) * 0.1   # agent weight
    b = jax.random.normal(kb, (1, C), dtype=jnp.float32) * 0.01  # agent bias

    sample, scores, entropy = gumbel_softmax_forward(
        x, w, b, kn1, temperature=temperature, straight_through=False)
    jax.block_until_ready((sample, scores, entropy))

    # Pure-JAX reference (noise is reproducible: same key / shape as the wrapper).
    r_scores = x @ w + b
    r_p = jax.nn.softmax(r_scores, axis=-1)
    r_logp = jax.nn.log_softmax(r_scores, axis=-1)
    r_ent = -jnp.sum(r_p * r_logp, axis=-1)
    g_ref = jax.random.gumbel(kn1, (C, B), dtype=jnp.float32).T
    r_sample = jax.nn.softmax((r_scores + g_ref) / temperature, axis=-1)

    assert sample.shape == (B, C) and scores.shape == (B, C) and entropy.shape == (B,)
    assert jnp.allclose(scores, r_scores, rtol=1e-3, atol=1e-4)
    assert jnp.allclose(entropy, r_ent, rtol=1e-3, atol=1e-4)
    assert jnp.allclose(sample, r_sample, rtol=2e-3, atol=2e-3)
    assert jnp.all(jnp.isfinite(sample))
    assert jnp.all(sample >= 0.0) and jnp.all(sample <= 1.0 + 1e-5)
    assert jnp.allclose(jnp.sum(sample, axis=-1), 1.0, atol=1e-3)

    # straight-through: forward value is a hard one-hot at the relaxed-sample argmax
    hard, _, _ = gumbel_softmax_forward(
        x, w, b, kn2, temperature=temperature, straight_through=True)
    jax.block_until_ready(hard)
    assert jnp.allclose(jnp.sum(hard, axis=-1), 1.0, atol=1e-6)
    assert jnp.all((hard == 0.0) | (hard == 1.0))
    g_hard = jax.random.gumbel(kn2, (C, B), dtype=jnp.float32).T
    assert jnp.all(jnp.argmax(hard, axis=-1)
                   == jnp.argmax(r_scores + g_hard, axis=-1))

    # non-divisible batch size exercises the padding path
    s2, sc2, e2 = gumbel_softmax_forward(
        x[:10], w, b, kn1, temperature=temperature)
    jax.block_until_ready((s2, sc2, e2))
    assert s2.shape == (10, C) and sc2.shape == (10, C) and e2.shape == (10,)
    assert jnp.allclose(sc2, r_scores[:10], rtol=1e-3, atol=1e-4)

    print("KERNEL_OK")
</pallas_src>

<mosaic_0001>
module attributes {stable_mosaic.version = 11 : i64} {
  func.func @gumbel_softmax_kernel(%arg0: i32, %arg1: memref<16x32xf32, #tpu.memory_space<vmem>>, %arg2: memref<16x32xf32, #tpu.memory_space<vmem>>, %arg3: memref<16x1xf32, #tpu.memory_space<vmem>>, %arg4: memref<16x16xf32, #tpu.memory_space<vmem>>, %arg5: memref<16x16xf32, #tpu.memory_space<vmem>>, %arg6: memref<16x16xf32, #tpu.memory_space<vmem>>, %arg7: memref<1x16xf32, #tpu.memory_space<vmem>>) attributes {dimension_semantics = [#tpu.dimension_semantics<parallel>], iteration_bounds = array<i64: 1>, scalar_prefetch = 0 : i64, scratch_operands = 0 : i64, tpu.core_type = #tpu.core_type<tc>, window_params = [{transform_indices = @transform_0, window_bounds = array<i64: 16, 32>}, {pipeline_mode = #tpu.pipeline_mode<synchronous>, transform_indices = @transform_1, window_bounds = array<i64: 16, 32>}, {pipeline_mode = #tpu.pipeline_mode<synchronous>, transform_indices = @transform_2, window_bounds = array<i64: 16, 1>}, {transform_indices = @transform_3, window_bounds = array<i64: 16, 16>}, {transform_indices = @transform_4, window_bounds = array<i64: 16, 16>}, {transform_indices = @transform_5, window_bounds = array<i64: 16, 16>}, {transform_indices = @transform_6, window_bounds = array<i64: 1, 16>}]} {
    %c0 = arith.constant 0 : index
    %c0_0 = arith.constant 0 : index
    %0 = vector.load %arg2[%c0, %c0_0] : memref<16x32xf32, #tpu.memory_space<vmem>>, vector<16x32xf32>
    %c0_1 = arith.constant 0 : index
    %c0_2 = arith.constant 0 : index
    %1 = vector.load %arg1[%c0_1, %c0_2] : memref<16x32xf32, #tpu.memory_space<vmem>>, vector<16x32xf32>
    %cst = arith.constant dense<0.000000e+00> : vector<16x16xf32>
    %2 = tpu.matmul %0, %1, %cst {dimension_numbers = #tpu.dot_dimension_numbers<[1], [1], [0], [0], [0, 0, 1, 0], [], []>} : vector<16x32xf32>, vector<16x32xf32>, vector<16x16xf32> -> vector<16x16xf32>
    %c0_3 = arith.constant 0 : index
    %c0_4 = arith.constant 0 : index
    %3 = vector.load %arg3[%c0_3, %c0_4] : memref<16x1xf32, #tpu.memory_space<vmem>>, vector<16x1xf32>
    %4 = vector.broadcast %3 : vector<16x1xf32> to vector<16x16xf32>
    %5 = arith.addf %2, %4 : vector<16x16xf32>
    %c0_5 = arith.constant 0 : index
    %c0_6 = arith.constant 0 : index
    %6 = vector.load %arg6[%c0_5, %c0_6] : memref<16x16xf32, #tpu.memory_space<vmem>>, vector<16x16xf32>
    tpu.vector_store %arg6[%c0_5, %c0_6], %5 {strides = array<i32>} : memref<16x16xf32, #tpu.memory_space<vmem>>, vector<16x16xf32>,
    %c0_7 = arith.constant 0 : index
    %c0_8 = arith.constant 0 : index
    %7 = vector.load %arg4[%c0_7, %c0_8] : memref<16x16xf32, #tpu.memory_space<vmem>>, vector<16x16xf32>
    %8 = arith.addf %5, %7 : vector<16x16xf32>
    %cst_9 = arith.constant 1.42857146 : f32
    %9 = vector.broadcast %cst_9 : f32 to vector<16x16xf32>
    %10 = arith.mulf %8, %9 : vector<16x16xf32>
    %cst_10 = arith.constant dense<0xFF800000> : vector<16xf32>
    %11 = vector.multi_reduction <maximumf>, %10, %cst_10 [0] : vector<16x16xf32> to vector<16xf32>
    %12 = vector.shape_cast %11 : vector<16xf32> to vector<1x16xf32>
    %13 = vector.broadcast %12 : vector<1x16xf32> to vector<16x16xf32>
    %14 = arith.subf %10, %13 : vector<16x16xf32>
    %15 = math.exp %14 : vector<16x16xf32>
    %cst_11 = arith.constant dense<0.000000e+00> : vector<16xf32>
    %16 = vector.multi_reduction <add>, %15, %cst_11 [0] : vector<16x16xf32> to vector<16xf32>
    %17 = vector.shape_cast %16 : vector<16xf32> to vector<1x16xf32>
    %cst_12 = arith.constant 1.000000e+00 : f32
    %18 = vector.broadcast %cst_12 : f32 to vector<1x16xf32>
    %19 = arith.divf %18, %17 : vector<1x16xf32>
    %20 = vector.broadcast %19 : vector<1x16xf32> to vector<16x16xf32>
    %21 = arith.mulf %15, %20 : vector<16x16xf32>
    %c0_13 = arith.constant 0 : index
    %c0_14 = arith.constant 0 : index
    %22 = vector.load %arg5[%c0_13, %c0_14] : memref<16x16xf32, #tpu.memory_space<vmem>>, vector<16x16xf32>
    tpu.vector_store %arg5[%c0_13, %c0_14], %21 {strides = array<i32>} : memref<16x16xf32, #tpu.memory_space<vmem>>, vector<16x16xf32>,
    %cst_15 = arith.constant dense<0xFF800000> : vector<16xf32>
    %23 = vector.multi_reduction <maximumf>, %5, %cst_15 [0] : vector<16x16xf32> to vector<16xf32>
    %24 = vector.shape_cast %23 : vector<16xf32> to vector<1x16xf32>
    %25 = vector.broadcast %24 : vector<1x16xf32> to vector<16x16xf32>
    %26 = arith.subf %5, %25 : vector<16x16xf32>
    %27 = math.exp %26 : vector<16x16xf32>
    %cst_16 = arith.constant dense<0.000000e+00> : vector<16xf32>
    %28 = vector.multi_reduction <add>, %27, %cst_16 [0] : vector<16x16xf32> to vector<16xf32>
    %29 = vector.shape_cast %28 : vector<16xf32> to vector<1x16xf32>
    %30 = math.log %29 : vector<1x16xf32>
    %31 = arith.mulf %27, %26 : vector<16x16xf32>
    %cst_17 = arith.constant dense<0.000000e+00> : vector<16xf32>
    %32 = vector.multi_reduction <add>, %31, %cst_17 [0] : vector<16x16xf32> to vector<16xf32>
    %33 = vector.shape_cast %32 : vector<16xf32> to vector<1x16xf32>
    %34 = arith.divf %33, %29 : vector<1x16xf32>
    %35 = arith.subf %30, %34 : vector<1x16xf32>
    %c0_18 = arith.constant 0 : index
    %c0_19 = arith.constant 0 : index
    %36 = vector.load %arg7[%c0_18, %c0_19] : memref<1x16xf32, #tpu.memory_space<vmem>>, vector<1x16xf32>
    tpu.vector_store %arg7[%c0_18, %c0_19], %35 {strides = array<i32>} : memref<1x16xf32, #tpu.memory_space<vmem>>, vector<1x16xf32>,
    return
  }
  func.func @transform_0(%arg0: i32) -> (i32, i32) {
    %c0_i32 = arith.constant 0 : i32
    %c0_i32_0 = arith.constant 0 : i32
    return %arg0, %c0_i32 : i32, i32
  }
  func.func @transform_1(%arg0: i32) -> (i32, i32) {
    %c0_i32 = arith.constant 0 : i32
    %c0_i32_0 = arith.constant 0 : i32
    %c0_i32_1 = arith.constant 0 : i32
    return %c0_i32, %c0_i32_0 : i32, i32
  }
  func.func @transform_2(%arg0: i32) -> (i32, i32) {
    %c0_i32 = arith.constant 0 : i32
    %c0_i32_0 = arith.constant 0 : i32
    %c0_i32_1 = arith.constant 0 : i32
    return %c0_i32, %c0_i32_0 : i32, i32
  }
  func.func @transform_3(%arg0: i32) -> (i32, i32) {
    %c0_i32 = arith.constant 0 : i32
    %c0_i32_0 = arith.constant 0 : i32
    return %c0_i32, %arg0 : i32, i32
  }
  func.func @transform_4(%arg0: i32) -> (i32, i32) {
    %c0_i32 = arith.constant 0 : i32
    %c0_i32_0 = arith.constant 0 : i32
    return %c0_i32, %arg0 : i32, i32
  }
  func.func @transform_5(%arg0: i32) -> (i32, i32) {
    %c0_i32 = arith.constant 0 : i32
    %c0_i32_0 = arith.constant 0 : i32
    return %c0_i32, %arg0 : i32, i32
  }
  func.func @transform_6(%arg0: i32) -> (i32, i32) {
    %c0_i32 = arith.constant 0 : i32
    %c0_i32_0 = arith.constant 0 : i32
    return %c0_i32, %arg0 : i32, i32
  }
}

</mosaic_0001>

<llo_original>
// kernel: tpu_custom_call.1
$region0: #{tpu_custom_call.1}
  #allocation0 [shape = 'u32[]', space=smem, size = 0x4, offset = 0x4, fixed_abs, tag = 'smem constant byte address 0x4 - core index']
  #allocation1 [shape = 'u32[144,128]{1,0:T(1,128)}', space=vmem, size = 0x12000, scoped, tag = 'internal scratch']
  %s0 = inlined_call_operand.vmem [shape: f32[16,32], index: 0, kind: input, shape index: {}]
  %s1 = inlined_call_operand.hbm [shape: f32[16,32], index: 1, kind: input, shape index: {}]
  %s2 = inlined_call_operand.vmem [shape: f32[16,1], index: 2, kind: input, shape index: {}]
  %s3 = inlined_call_operand.hbm [shape: f32[16,16], index: 3, kind: input, shape index: {}]
  %s4 = inlined_call_operand.hbm [shape: f32[16,16], index: 4, kind: output, shape index: {0}]
  %s5 = inlined_call_operand.hbm [shape: f32[16,16], index: 5, kind: output, shape index: {1}]
  %s6 = inlined_call_operand.hbm [shape: f32[1,16], index: 6, kind: output, shape index: {2}]
  %7 = xla_tuple %s4, %s5, %s6
  %s8 = sld [smem:[#allocation0]]
  $region50: #{tpu_custom_call.1} parent=0
    _
  %s10 = ssub.s32 1, %s8
  %s11 = scalar_select 0, %s10, %s8
  $region1: #{tpu_custom_call.1} parent=0
    #allocation2 [shape = 'u8[8192]{0}', space=vmem, size = 0x2000, scoped, tag = 'input window, operand 1, single buffered']
    #allocation3 [shape = 's32[1]{0}', space=sflag, size = 0x4, scoped, tag = 'scoped memory for tpu_custom_call.1']
    #allocation4 [shape = 's32[1]{0}', space=sflag, size = 0x4, scoped, tag = 'scoped memory for tpu_custom_call.1']
    #allocation5 [shape = 'u8[8192]{0}', space=vmem, size = 0x2000, scoped, tag = 'input window, operand 3, single buffered']
    #allocation6 [shape = 's32[1]{0}', space=sflag, size = 0x4, scoped, tag = 'scoped memory for tpu_custom_call.1']
    #allocation7 [shape = 'u8[8192]{0}', space=vmem, size = 0x2000, scoped, tag = 'output window, operand 0, single buffered']
    #allocation8 [shape = 'u8[8192]{0}', space=vmem, size = 0x2000, scoped, tag = 'output window, operand 1, single buffered']
    #allocation9 [shape = 's32[1]{0}', space=sflag, size = 0x4, scoped, tag = 'scoped memory for tpu_custom_call.1']
    #allocation10 [shape = 'u8[512]{0}', space=vmem, size = 0x400, scoped, tag = 'output window, operand 2, single buffered']
    %12 = vsyncpa [#allocation3], 0
    %13 = vsyncpa [#allocation6], 0
    %14 = vsyncpa [#allocation4], 0
    %15 = vsyncpa [#allocation9], 0
    // Predicated region
    $region2: #{tpu_custom_call.1} parent=1 // pred_check
      _
    $region3: #{tpu_custom_call.1} parent=1 // pred_check_branch
      %17 = sbr.rel (0) target = $region5
    $region4: #{tpu_custom_call.1} parent=1 // pred_region
      _
    $region5: #{tpu_custom_call.1} parent=1 // pred_fallthru
      _
    // Predicated region
    $region6: #{tpu_custom_call.1} parent=1 // pred_check
      _
    $region7: #{tpu_custom_call.1} parent=1 // pred_check_branch
      %19 = sbr.rel (0) target = $region9
    $region8: #{tpu_custom_call.1} parent=1 // pred_region
      %s21 = ssub.s32 256, 256
      %22 = vsyncadd [#allocation3], %s21
      %s23 = sshll.u32 [#allocation2], 4
      %s24 = int_to_ptr.vmem [resolvable:$true] %s23
      %29 = dma.hbm_to_vmem [thread:$0]  %s1, 256, %s24, [#allocation3], 128, 128, 8
    $region9: #{tpu_custom_call.1} parent=1 // pred_fallthru
      _
    // Predicated region
    $region10: #{tpu_custom_call.1} parent=1 // pred_check
      _
    $region11: #{tpu_custom_call.1} parent=1 // pred_check_branch
      %31 = sbr.rel (0) target = $region13
    $region12: #{tpu_custom_call.1} parent=1 // pred_region
      _
    $region13: #{tpu_custom_call.1} parent=1 // pred_fallthru
      _
    // Predicated region
    $region14: #{tpu_custom_call.1} parent=1 // pred_check
      _
    $region15: #{tpu_custom_call.1} parent=1 // pred_check_branch
      %33 = sbr.rel (0) target = $region17
    $region16: #{tpu_custom_call.1} parent=1 // pred_region
      %s35 = ssub.s32 256, 256
      %36 = vsyncadd [#allocation6], %s35
      %s37 = sshll.u32 [#allocation5], 4
      %s38 = int_to_ptr.vmem [resolvable:$true] %s37
      %43 = dma.hbm_to_vmem [thread:$0]  %s3, 256, %s38, [#allocation6], 128, 128, 8
    $region17: #{tpu_custom_call.1} parent=1 // pred_fallthru
      _
    // Predicated region
    $region18: #{tpu_custom_call.1} parent=1 // pred_check
      _
    $region19: #{tpu_custom_call.1} parent=1 // pred_check_branch
      %45 = sbr.rel (0) target = $region21
    $region20: #{tpu_custom_call.1} parent=1 // pred_region
      %46 = dma.done [#allocation3], 256
    $region21: #{tpu_custom_call.1} parent=1 // pred_fallthru
      _
    // Predicated region
    $region22: #{tpu_custom_call.1} parent=1 // pred_check
      _
    $region23: #{tpu_custom_call.1} parent=1 // pred_check_branch
      %48 = sbr.rel (0) target = $region25
    $region24: #{tpu_custom_call.1} parent=1 // pred_region
      %49 = dma.done [#allocation6], 256
    $region25: #{tpu_custom_call.1} parent=1 // pred_fallthru
      _
    %v50 = vld [vmem:[#allocation2] sm:$0xff]
    %v51 = vld [vmem:[#allocation2 + $0x8] sm:$0xff]
    %v52 = vld [vmem:[%s0] sm:$0xff]
    %v53 = vld [vmem:[%s0 + $0x8] sm:$0xff]
    %v54 = vld [vmem:[%s2] sm:$0xff]
    %v55 = vld [vmem:[%s2 + $0x8] sm:$0xff]
    %57 = vset.pattern.permute.xlu0 0
    %58 = vperm.xlu0 %57, %v54
    %v59 = vpop.permute.xlu0 %58
    %62 = vset.pattern.permute.xlu0 0
    %63 = vperm.xlu0 %62, %v55
    %v64 = vpop.permute.xlu0 %63
    %vm66 = vcmask 261120
    %v68 = vsel %vm66, %v50, 0
    %v71 = vsel %vm66, %v51, 0
    %v74 = vsel %vm66, %v52, 0
    %v77 = vsel %vm66, %v53, 0
    %79 = vmatprep.subr.mxu0 0.0
    %80 = vmatpush1.xpose.msra.mxu0 %v74
    %81 = vmatprep.subr.mxu0 0.0
    %82 = vmatpush1.xpose.msra.mxu0 %v77
    %83 = vmatprep.subr.mxu0 0.0
    %84 = vmatpush1.xpose.msra.mxu0 0.0
    %85 = vmatprep.subr.mxu0 0.0
    %86 = vmatpush1.xpose.msra.mxu0 0.0
    %87 = vmatprep.subr.mxu0 0.0
    %88 = vmatpush1.xpose.msra.mxu0 0.0
    %89 = vmatprep.subr.mxu0 0.0
    %90 = vmatpush1.xpose.msra.mxu0 0.0
    %91 = vmatprep.subr.mxu0 0.0
    %92 = vmatpush1.xpose.msra.mxu0 0.0
    %93 = vmatprep.subr.mxu0 0.0
    %94 = vmatpush1.xpose.msra.mxu0 0.0
    %95 = vmatprep.subr.mxu0 0.0
    %96 = vmatpush1.xpose.msra.mxu0 0.0
    %97 = vmatprep.subr.mxu0 0.0
    %98 = vmatpush1.xpose.msra.mxu0 0.0
    %99 = vmatprep.subr.mxu0 0.0
    %100 = vmatpush1.xpose.msra.mxu0 0.0
    %101 = vmatprep.subr.mxu0 0.0
    %102 = vmatpush1.xpose.msra.mxu0 0.0
    %103 = vmatprep.subr.mxu0 0.0
    %104 = vmatpush1.xpose.msra.mxu0 0.0
    %105 = vmatprep.subr.mxu0 0.0
    %106 = vmatpush1.xpose.msra.mxu0 0.0
    %107 = vmatprep.subr.mxu0 0.0
    %108 = vmatpush1.xpose.msra.mxu0 0.0
    %109 = vmatprep.subr.mxu0 0.0
    %110 = vmatpush1.xpose.msra.mxu0 0.0
    %111 = vmatprep.subr.mxu0 0.0
    %112 = vmatpush1.xpose.msra.mxu0 0.0
    %113 = vmatprep.subr.mxu0 0.0
    %114 = vmatpush1.xpose.msra.mxu0 0.0
    %115 = vmatprep.subr.mxu0 0.0
    %116 = vmatpush1.xpose.msra.mxu0 0.0
    %117 = vmatprep.subr.mxu0 0.0
    %118 = vmatpush1.xpose.msra.mxu0 0.0
    %119 = vmatprep.subr.mxu0 0.0
    %120 = vmatpush1.xpose.msra.mxu0 0.0
    %121 = vmatprep.subr.mxu0 0.0
    %122 = vmatpush1.xpose.msra.mxu0 0.0
    %123 = vmatprep.subr.mxu0 0.0
    %124 = vmatpush1.xpose.msra.mxu0 0.0
    %125 = vmatprep.subr.mxu0 0.0
    %126 = vmatpush1.xpose.msra.mxu0 0.0
    %127 = vmatprep.subr.mxu0 0.0
    %128 = vmatpush1.xpose.msra.mxu0 0.0
    %129 = vmatprep.subr.mxu0 0.0
    %130 = vmatpush1.xpose.msra.mxu0 0.0
    %131 = vmatprep.subr.mxu0 0.0
    %132 = vmatpush1.xpose.msra.mxu0 0.0
    %133 = vmatprep.subr.mxu0 0.0
    %134 = vmatpush1.xpose.msra.mxu0 0.0
    %135 = vmatprep.subr.mxu0 0.0
    %136 = vmatpush1.xpose.msra.mxu0 0.0
    %137 = vmatprep.subr.mxu0 0.0
    %138 = vmatpush1.xpose.msra.mxu0 0.0
    %139 = vmatprep.subr.mxu0 0.0
    %140 = vmatpush1.xpose.msra.mxu0 0.0
    %141 = vmatprep.subr.mxu0 0.0
    %142 = vmatpush1.xpose.msra.mxu0 0.0
    %143 = vmatprep.mubr.f32.mxu0 0.0
    %144 = vmatmul.mubr.f32.gmra.mrb[0].mxu0 %v68
    %v145 = vpop.f32.mrb[0].mxu0
    %v146 = vadd.f32 %v59, %v145
    %v147 = vpop.f32.mrb[0].mxu0
    %148 = vmatprep.mubr.f32.mxu0 0.0
    %149 = vmatmul.mubr.f32.gmra.mrb[0].mxu0 %v71
    %v150 = vpop.f32.mrb[0].mxu0
    %v151 = vadd.f32 %v64, %v150
    %v152 = vpop.f32.mrb[0].mxu0
    %153 = vdwg.mxu0
    %vm154 = vcmask 130048
    %155 = vst.msk [vmem:[#allocation8] sm:$0xff] %vm154, %v146
    %156 = vst.msk [vmem:[#allocation8 + $0x8] sm:$0xff] %vm154, %v151
    %v157 = vld [vmem:[#allocation5] sm:$0xff]
    %v158 = vld [vmem:[#allocation5 + $0x8] sm:$0xff]
    %v159 = vadd.f32 %v146, %v157
    %v160 = vadd.f32 %v151, %v158
    %v161 = vmul.f32 %v159, 1.4285715
    %v162 = vmul.f32 %v160, 1.4285715
    %v163 = vsel %vm154, %v161, -inf
    %v164 = vsel %vm154, %v162, -inf
    %v165 = vmax.f32 %v163, %v164
    %v166 = vrot.slane %v165, 4
    %v167 = vmax.f32 %v165, %v166
    %v168 = vrot.slane %v167, 2
    %v169 = vmax.f32 %v167, %v168
    %v170 = vrot.slane %v169, 1
    %v171 = vmax.f32 %v169, %v170
    %v172 = vsub.f32 %v161, %v171
    %v173 = vsub.f32 %v162, %v171
    %v174 = vmul.f32 %v172, 1.442695
    %v175 = vpow.pop %v174
    %v176 = vmul.f32 %v173, 1.442695
    %v177 = vpow.pop %v176
    %v178 = vsel %vm154, %v175, 0.0
    %v179 = vsel %vm154, %v177, 0.0
    %v180 = vadd.f32 %v178, %v179
    %v181 = vrot.slane %v180, 4
    %v182 = vadd.f32 %v180, %v181
    %v183 = vrot.slane %v182, 2
    %v184 = vadd.f32 %v182, %v183
    %v185 = vrot.slane %v184, 1
    %v186 = vadd.f32 %v184, %v185
    %v187 = vrcp.pop %v186
    %v188 = vmul.f32 1.0, %v187
    %v189 = vmul.f32 %v175, %v188
    %v190 = vmul.f32 %v177, %v188
    %191 = vst.msk [vmem:[#allocation7] sm:$0xff] %vm154, %v189
    %192 = vst.msk [vmem:[#allocation7 + $0x8] sm:$0xff] %vm154, %v190
    %v193 = vsel %vm154, %v146, -inf
    %v194 = vsel %vm154, %v151, -inf
    %v195 = vmax.f32 %v193, %v194
    %v196 = vrot.slane %v195, 4
    %v197 = vmax.f32 %v195, %v196
    %v198 = vrot.slane %v197, 2
    %v199 = vmax.f32 %v197, %v198
    %v200 = vrot.slane %v199, 1
    %v201 = vmax.f32 %v199, %v200
    %v202 = vsub.f32 %v146, %v201
    %v203 = vsub.f32 %v151, %v201
    %v204 = vmul.f32 %v202, 1.442695
    %v205 = vpow.pop %v204
    %v206 = vmul.f32 %v203, 1.442695
    %v207 = vpow.pop %v206
    %v208 = vsel %vm154, %v205, 0.0
    %v209 = vsel %vm154, %v207, 0.0
    %v210 = vadd.f32 %v208, %v209
    %v211 = vrot.slane %v210, 4
    %v212 = vadd.f32 %v210, %v211
    %v213 = vrot.slane %v212, 2
    %v214 = vadd.f32 %v212, %v213
    %v215 = vrot.slane %v214, 1
    %v216 = vadd.f32 %v214, %v215
    %v217 = vlog2.pop %v216
    %v218 = vmul.f32 %v217, 0.6931472
    %v219 = vmul.f32 %v205, %v202
    %v220 = vmul.f32 %v207, %v203
    %v221 = vsel %vm154, %v219, 0.0
    %v222 = vsel %vm154, %v220, 0.0
    %v223 = vadd.f32 %v221, %v222
    %v224 = vrot.slane %v223, 4
    %v225 = vadd.f32 %v223, %v224
    %v226 = vrot.slane %v225, 2
    %v227 = vadd.f32 %v225, %v226
    %v228 = vrot.slane %v227, 1
    %v229 = vadd.f32 %v227, %v228
    %v230 = vrcp.pop %v216
    %v231 = vmul.f32 %v229, %v230
    %v232 = vsub.f32 %v218, %v231
    %vm233 = vcmask 122880
    %234 = vst.msk [vmem:[#allocation10] sm:$0x1] %vm233, %v232
    // Predicated region
    $region26: #{tpu_custom_call.1} parent=1 // pred_check
      _
    $region27: #{tpu_custom_call.1} parent=1 // pred_check_branch
      %236 = sbr.rel (0) target = $region29
    $region28: #{tpu_custom_call.1} parent=1 // pred_region
      %s238 = ssub.s32 256, 256
      %239 = vsyncadd [#allocation4], %s238
      %s240 = sshll.u32 [#allocation7], 4
      %s241 = int_to_ptr.vmem [resolvable:$true] %s240
      %246 = dma.vmem_to_hbm [thread:$0]  %s241, 256, %s4, [#allocation4], 128, 128, 8
    $region29: #{tpu_custom_call.1} parent=1 // pred_fallthru
      _
    // Predicated region
    $region30: #{tpu_custom_call.1} parent=1 // pred_check
      _
    $region31: #{tpu_custom_call.1} parent=1 // pred_check_branch
      %248 = sbr.rel (0) target = $region33
    $region32: #{tpu_custom_call.1} parent=1 // pred_region
      %s250 = ssub.s32 256, 256
      %251 = vsyncadd [#allocation9], %s250
      %s252 = sshll.u32 [#allocation8], 4
      %s253 = int_to_ptr.vmem [resolvable:$true] %s252
      %258 = dma.vmem_to_hbm [thread:$0]  %s253, 256, %s5, [#allocation9], 128, 128, 8
    $region33: #{tpu_custom_call.1} parent=1 // pred_fallthru
      _
    // Predicated region
    $region34: #{tpu_custom_call.1} parent=1 // pred_check
      _
    $region35: #{tpu_custom_call.1} parent=1 // pred_check_branch
      %260 = sbr.rel (0) target = $region37
    $region36: #{tpu_custom_call.1} parent=1 // pred_region
      %s262 = ssub.s32 16, 16
      %263 = vsyncadd [#allocation9], %s262
      %s265 = sshll.u32 [#allocation10], 4
      %s266 = int_to_ptr.vmem [resolvable:$true] %s265
      %268 = dma.vmem_to_hbm [thread:$0]  %s266, 16, %s6, [#allocation9]
    $region37: #{tpu_custom_call.1} parent=1 // pred_fallthru
      _
    // Predicated region
    $region38: #{tpu_custom_call.1} parent=1 // pred_check
      _
    $region39: #{tpu_custom_call.1} parent=1 // pred_check_branch
      %270 = sbr.rel (0) target = $region41
    $region40: #{tpu_custom_call.1} parent=1 // pred_region
      %271 = dma.done [#allocation4], 256
    $region41: #{tpu_custom_call.1} parent=1 // pred_fallthru
      _
    // Predicated region
    $region42: #{tpu_custom_call.1} parent=1 // pred_check
      _
    $region43: #{tpu_custom_call.1} parent=1 // pred_check_branch
      %273 = sbr.rel (0) target = $region45
    $region44: #{tpu_custom_call.1} parent=1 // pred_region
      %274 = dma.done [#allocation9], 256
    $region45: #{tpu_custom_call.1} parent=1 // pred_fallthru
      _
    // Predicated region
    $region46: #{tpu_custom_call.1} parent=1 // pred_check
      _
    $region47: #{tpu_custom_call.1} parent=1 // pred_check_branch
      %276 = sbr.rel (0) target = $region49
    $region48: #{tpu_custom_call.1} parent=1 // pred_region
      %277 = dma.done [#allocation9], 16
    $region49: #{tpu_custom_call.1} parent=1 // pred_fallthru
      _
    %278 = vsyncpa [#allocation3], 1
    %279 = vsyncpa [#allocation6], 1
    %280 = vsyncpa [#allocation4], 1
    %281 = vsyncpa [#allocation9], 1

</llo_original>
